<compile_context>
chip_gen: v7x
topology: tpu7x:2x2x1
jax: 0.10.0
libtpu: 0.0.40
codegen_flags: <defaults>
</compile_context>

<pallas_src>
import math

import jax
import jax.numpy as jnp
from jax.experimental import pallas as pl
from jax.experimental.pallas import tpu as pltpu


def _add_pos_kernel(x_ref, pos_ref, o_ref):
    # x_ref / o_ref: (TR, D) tile of flattened (seq*batch) rows, TR = TP * B
    # pos_ref:       (TP, D) matching positional-embedding rows
    x = x_ref[...]
    pos = pos_ref[...]
    tp, d = pos.shape
    tr = x.shape[0]
    b = tr // tp
    if b == 1:
        pos_rows = pos
    else:
        # Repeat each pos row across the B consecutive batch rows it covers:
        # pos_rows[q] == pos[q // B]  (sublane repeat).
        pos_rows = jnp.broadcast_to(pos[:, None, :], (tp, b, d)).reshape(tr, d)
    # Add in the promoted dtype (matches torch promotion), cast once on store.
    o_ref[...] = (x + pos_rows).astype(o_ref.dtype)


def _round_up(v: int, m: int) -> int:
    return ((v + m - 1) // m) * m


def _pick_row_tile(R: int, B: int, D: int, itemsize: int,
                   vmem_working_set_bytes: int):
    """Rows per grid step for the flattened (S*B, D) layout, or None for tiny."""
    # Row-tile granularity: multiples of 8*B keep x-tile rows divisible by 8
    # and by B, and pos-tile rows (tile/B) divisible by 8 -> layout-legal.
    unit = 8 * B
    if R < unit:
        return None  # tiny problem: single full-extent block fallback
    # Pipeline working set per step: 2x x-tile + 2x out-tile + 2x pos-tile.
    bytes_per_row = (4.0 + 2.0 / B) * D * itemsize
    tr_budget = max(unit, (int(vmem_working_set_bytes // bytes_per_row) // unit) * unit)
    # Aim for at least two grid steps so v7x's two TensorCores both get tiles
    # and the double-buffer pipeline has something to overlap.
    tr_target = max(unit, _round_up((R + 1) // 2, unit))
    tr = min(tr_budget, tr_target)
    # Safety clamp: never exceed the padded row extent.
    return min(tr, _round_up(R, unit))


def learnable_positional_embedding_fwd(
    x: jax.Array,
    pos_embedding: jax.Array,
    *,
    vmem_working_set_bytes: int = 12 * 1024 * 1024,
    vmem_limit_bytes: int = 32 * 1024 * 1024,
    donate_x: bool = False,
) -> jax.Array:
    """x: (S, B, D); pos_embedding: (seq_len, D) with seq_len >= S.

    If donate_x=True the output aliases (overwrites) x's buffer; only use when
    the caller does not read x afterwards.
    """
    S, B, D = x.shape
    R = S * B
    x2 = x.reshape(R, D)  # free view: (S, B, D) is contiguous seq-first

    tr = _pick_row_tile(R, B, D, x.dtype.itemsize, vmem_working_set_bytes)

    if tr is None:
        # Tiny problem (< 8*B rows): one block covering everything.  Slice pos
        # to exactly S rows so the (S, D) block equals the full array (legal
        # without 8-row divisibility).  For problems this small a fused XLA
        # broadcast-add would beat a kernel dispatch; path kept for coverage.
        tr, tp = R, S
        pos_arr = pos_embedding[:S, :]
        grid = (1,)
    else:
        tp = tr // B
        pos_arr = pos_embedding  # first S rows addressed through the index_map
        grid = (pl.cdiv(R, tr),)

    out2 = pl.pallas_call(
        _add_pos_kernel,
        out_shape=jax.ShapeDtypeStruct((R, D), x.dtype),
        grid_spec=pltpu.PrefetchScalarGridSpec(
            num_scalar_prefetch=0,
            grid=grid,
            in_specs=[
                pl.BlockSpec((tr, D), lambda i: (i, 0)),   # x rows
                pl.BlockSpec((tp, D), lambda i: (i, 0)),   # pos rows (tile/B)
            ],
            out_specs=pl.BlockSpec((tr, D), lambda i: (i, 0)),
        ),
        compiler_params=pltpu.CompilerParams(
            dimension_semantics=("parallel",),
            vmem_limit_bytes=vmem_limit_bytes,
        ),
        input_output_aliases=({0: 0} if donate_x else {}),
    )(x2, pos_arr)

    return out2.reshape(S, B, D)


def init_pos_embedding(key, seq_len: int, d_model: int, dtype=jnp.float32) -> jax.Array:
    # xavier_uniform_ equivalent: U(-a, a), a = sqrt(6 / (fan_in + fan_out))
    bound = math.sqrt(6.0 / (seq_len + d_model))
    return jax.random.uniform(
        key, (seq_len, d_model), dtype=dtype, minval=-bound, maxval=bound
    )


if __name__ == "__main__":
    key = jax.random.PRNGKey(0)
    k_x, k_p = jax.random.split(key)

    seq_len, batch, d_model = 8, 2, 32

    x = jax.random.normal(k_x, (seq_len, batch, d_model), dtype=jnp.float32)
    pos_embedding = init_pos_embedding(k_p, seq_len, d_model, dtype=jnp.float32)

    out = learnable_positional_embedding_fwd(x, pos_embedding)
    out = jax.block_until_ready(out)

    # Reference check (plain JAX) to confirm semantics.
    ref = x + pos_embedding[:seq_len, :][:, None, :]
    assert out.shape == (seq_len, batch, d_model)
    assert jnp.allclose(out, ref, atol=1e-6), "mismatch vs reference"

    print("KERNEL_OK")
</pallas_src>

<mosaic_0001>
module attributes {stable_mosaic.version = 11 : i64} {
  func.func @_add_pos_kernel(%arg0: i32, %arg1: memref<16x32xf32, #tpu.memory_space<vmem>>, %arg2: memref<8x32xf32, #tpu.memory_space<vmem>>, %arg3: memref<16x32xf32, #tpu.memory_space<vmem>>) attributes {dimension_semantics = [#tpu.dimension_semantics<parallel>], iteration_bounds = array<i64: 1>, scalar_prefetch = 0 : i64, scratch_operands = 0 : i64, tpu.core_type = #tpu.core_type<tc>, window_params = [{transform_indices = @transform_0, window_bounds = array<i64: 16, 32>}, {transform_indices = @transform_1, window_bounds = array<i64: 8, 32>}, {transform_indices = @transform_2, window_bounds = array<i64: 16, 32>}]} {
    %c0 = arith.constant 0 : index
    %c0_0 = arith.constant 0 : index
    %0 = vector.load %arg1[%c0, %c0_0] : memref<16x32xf32, #tpu.memory_space<vmem>>, vector<16x32xf32>
    %c0_1 = arith.constant 0 : index
    %c0_2 = arith.constant 0 : index
    %1 = vector.load %arg2[%c0_1, %c0_2] : memref<8x32xf32, #tpu.memory_space<vmem>>, vector<8x32xf32>
    %2 = vector.shape_cast %1 : vector<8x32xf32> to vector<8x1x32xf32>
    %3 = vector.shape_cast %2 : vector<8x1x32xf32> to vector<8x1x32xf32>
    %4 = vector.broadcast %3 : vector<8x1x32xf32> to vector<8x2x32xf32>
    %5 = vector.shape_cast %4 : vector<8x2x32xf32> to vector<16x32xf32>
    %6 = arith.addf %0, %5 : vector<16x32xf32>
    %c0_3 = arith.constant 0 : index
    %c0_4 = arith.constant 0 : index
    %7 = vector.load %arg3[%c0_3, %c0_4] : memref<16x32xf32, #tpu.memory_space<vmem>>, vector<16x32xf32>
    tpu.vector_store %arg3[%c0_3, %c0_4], %6 {strides = array<i32>} : memref<16x32xf32, #tpu.memory_space<vmem>>, vector<16x32xf32>,
    return
  }
  func.func @transform_0(%arg0: i32) -> (i32, i32) {
    %c0_i32 = arith.constant 0 : i32
    %c0_i32_0 = arith.constant 0 : i32
    return %arg0, %c0_i32 : i32, i32
  }
  func.func @transform_1(%arg0: i32) -> (i32, i32) {
    %c0_i32 = arith.constant 0 : i32
    %c0_i32_0 = arith.constant 0 : i32
    return %arg0, %c0_i32 : i32, i32
  }
  func.func @transform_2(%arg0: i32) -> (i32, i32) {
    %c0_i32 = arith.constant 0 : i32
    %c0_i32_0 = arith.constant 0 : i32
    return %arg0, %c0_i32 : i32, i32
  }
}

</mosaic_0001>

<llo_original>
// kernel: tpu_custom_call.1
$region0: #{tpu_custom_call.1}
  #allocation0 [shape = 'u32[]', space=smem, size = 0x4, offset = 0x4, fixed_abs, tag = 'smem constant byte address 0x4 - core index']
  #allocation1 [shape = 'u32[144,128]{1,0:T(1,128)}', space=vmem, size = 0x12000, scoped, tag = 'internal scratch']
  %s0 = inlined_call_operand.hbm [shape: f32[16,32], index: 0, kind: input, shape index: {}]
  %s1 = inlined_call_operand.hbm [shape: f32[8,32], index: 1, kind: input, shape index: {}]
  %s2 = inlined_call_operand.hbm [shape: f32[16,32], index: 2, kind: output, shape index: {}]
  %s3 = sld [smem:[#allocation0]]
  $region26: #{tpu_custom_call.1} parent=0
    _
  %s5 = ssub.s32 1, %s3
  %s6 = scalar_select 0, %s5, %s3
  $region1: #{tpu_custom_call.1} parent=0
    #allocation2 [shape = 'u8[8192]{0}', space=vmem, size = 0x2000, scoped, tag = 'input window, operand 0, single buffered']
    #allocation3 [shape = 's32[1]{0}', space=sflag, size = 0x4, scoped, tag = 'scoped memory for tpu_custom_call.1']
    #allocation4 [shape = 's32[1]{0}', space=sflag, size = 0x4, scoped, tag = 'scoped memory for tpu_custom_call.1']
    #allocation5 [shape = 'u8[4096]{0}', space=vmem, size = 0x1000, scoped, tag = 'input window, operand 1, single buffered']
    #allocation6 [shape = 's32[1]{0}', space=sflag, size = 0x4, scoped, tag = 'scoped memory for tpu_custom_call.1']
    #allocation7 [shape = 'u8[8192]{0}', space=vmem, size = 0x2000, scoped, tag = 'output window, operand 0, single buffered']
    %7 = vsyncpa [#allocation3], 0
    %8 = vsyncpa [#allocation6], 0
    %9 = vsyncpa [#allocation4], 0
    // Predicated region
    $region2: #{tpu_custom_call.1} parent=1 // pred_check
      _
    $region3: #{tpu_custom_call.1} parent=1 // pred_check_branch
      %11 = sbr.rel (0) target = $region5
    $region4: #{tpu_custom_call.1} parent=1 // pred_region
      %s13 = ssub.s32 256, 256
      %14 = vsyncadd [#allocation3], %s13
      %s15 = sshll.u32 [#allocation2], 4
      %s16 = int_to_ptr.vmem [resolvable:$true] %s15
      %21 = dma.hbm_to_vmem [thread:$0]  %s0, 256, %s16, [#allocation3], 128, 128, 8
    $region5: #{tpu_custom_call.1} parent=1 // pred_fallthru
      _
    // Predicated region
    $region6: #{tpu_custom_call.1} parent=1 // pred_check
      _
    $region7: #{tpu_custom_call.1} parent=1 // pred_check_branch
      %23 = sbr.rel (0) target = $region9
    $region8: #{tpu_custom_call.1} parent=1 // pred_region
      %s25 = ssub.s32 128, 128
      %26 = vsyncadd [#allocation6], %s25
      %s28 = sshll.u32 [#allocation5], 4
      %s29 = int_to_ptr.vmem [resolvable:$true] %s28
      %31 = dma.hbm_to_vmem [thread:$0]  %s1, 128, %s29, [#allocation6]
    $region9: #{tpu_custom_call.1} parent=1 // pred_fallthru
      _
    // Predicated region
    $region10: #{tpu_custom_call.1} parent=1 // pred_check
      _
    $region11: #{tpu_custom_call.1} parent=1 // pred_check_branch
      %33 = sbr.rel (0) target = $region13
    $region12: #{tpu_custom_call.1} parent=1 // pred_region
      %34 = dma.done [#allocation3], 256
    $region13: #{tpu_custom_call.1} parent=1 // pred_fallthru
      _
    // Predicated region
    $region14: #{tpu_custom_call.1} parent=1 // pred_check
      _
    $region15: #{tpu_custom_call.1} parent=1 // pred_check_branch
      %36 = sbr.rel (0) target = $region17
    $region16: #{tpu_custom_call.1} parent=1 // pred_region
      %37 = dma.done [#allocation6], 128
    $region17: #{tpu_custom_call.1} parent=1 // pred_fallthru
      _
    %v38 = vld [vmem:[#allocation2] sm:$0xff]
    %v39 = vld [vmem:[#allocation2 + $0x8] sm:$0xff]
    %v40 = vld [vmem:[#allocation5] sm:$0xff]
    %v42 = vcombine.high %v40, %v40
    %v44 = vunpack.c.l.s4 1966171168
    %v45 = vunpack.c.0.s8 %v44
    %v46 = vlaneseq
    %v47 = vshrl.u32 %v46, 7
    %v48 = vsub.s32 %v45, %v47
    %v49 = vrot.slane %v40, %v48
    %v51 = vunpack.c.l.s4 1966171168
    %v52 = vunpack.c.0.s8 %v51
    %v53 = vlaneseq
    %v54 = vshrl.u32 %v53, 7
    %v55 = vsub.s32 %v52, %v54
    %v56 = vrot.slane %v42, %v55
    %v57 = vcombine.high %v49, %v49
    %v58 = vcombine.high %v56, %v56
    %v60 = vunpack.c.l.s4 1966171168
    %v61 = vunpack.c.0.s8 %v60
    %v62 = vlaneseq
    %v63 = vshrl.u32 %v62, 7
    %v64 = vsub.s32 %v61, %v63
    %v65 = vrot.slane %v49, %v64
    %v67 = vunpack.c.l.s4 1966171168
    %v68 = vunpack.c.0.s8 %v67
    %v69 = vlaneseq
    %v70 = vshrl.u32 %v69, 7
    %v71 = vsub.s32 %v68, %v70
    %v72 = vrot.slane %v56, %v71
    %v74 = vunpack.c.l.s4 1966171168
    %v75 = vunpack.c.0.s8 %v74
    %v76 = vlaneseq
    %v77 = vshrl.u32 %v76, 7
    %v78 = vsub.s32 %v75, %v77
    %v79 = vrot.slane %v57, %v78
    %v81 = vunpack.c.l.s4 1966171168
    %v82 = vunpack.c.0.s8 %v81
    %v83 = vlaneseq
    %v84 = vshrl.u32 %v83, 7
    %v85 = vsub.s32 %v82, %v84
    %v86 = vrot.slane %v58, %v85
    %v87 = vcombine.high %v65, %v65
    %v88 = vcombine.high %v72, %v72
    %v89 = vcombine.high %v79, %v79
    %v90 = vcombine.high %v86, %v86
    %v91 = vlaneseq
    %v92 = vshrl.u32 %v91, 7
    %v93 = vsub.s32 0, %v92
    %v94 = vrot.slane %v65, %v93
    %v95 = vlaneseq
    %v96 = vshrl.u32 %v95, 7
    %v97 = vsub.s32 0, %v96
    %v98 = vrot.slane %v79, %v97
    %v99 = vlaneseq
    %v100 = vshrl.u32 %v99, 7
    %v101 = vsub.s32 0, %v100
    %v102 = vrot.slane %v87, %v101
    %v103 = vlaneseq
    %v104 = vshrl.u32 %v103, 7
    %v105 = vsub.s32 0, %v104
    %v106 = vrot.slane %v89, %v105
    %v107 = vlaneseq
    %v108 = vshrl.u32 %v107, 7
    %v109 = vsub.s32 0, %v108
    %v110 = vrot.slane %v72, %v109
    %v111 = vlaneseq
    %v112 = vshrl.u32 %v111, 7
    %v113 = vsub.s32 0, %v112
    %v114 = vrot.slane %v86, %v113
    %v115 = vlaneseq
    %v116 = vshrl.u32 %v115, 7
    %v117 = vsub.s32 0, %v116
    %v118 = vrot.slane %v88, %v117
    %v119 = vlaneseq
    %v120 = vshrl.u32 %v119, 7
    %v121 = vsub.s32 0, %v120
    %v122 = vrot.slane %v90, %v121
    %v123 = vcombine.low %v94, %v98
    %v124 = vcombine.low %v102, %v106
    %v126 = vunpack.c.l.s4 1983009808
    %v127 = vunpack.c.0.s8 %v126
    %v128 = vlaneseq
    %v129 = vshrl.u32 %v128, 7
    %v130 = vsub.s32 %v127, %v129
    %v131 = vrot.slane %v123, %v130
    %v133 = vunpack.c.l.s4 1983009808
    %v134 = vunpack.c.0.s8 %v133
    %v135 = vlaneseq
    %v136 = vshrl.u32 %v135, 7
    %v137 = vsub.s32 %v134, %v136
    %v138 = vrot.slane %v124, %v137
    %v139 = vcombine.low %v131, %v138
    %v140 = vcombine.low %v110, %v114
    %v141 = vcombine.low %v118, %v122
    %v143 = vunpack.c.l.s4 1983009808
    %v144 = vunpack.c.0.s8 %v143
    %v145 = vlaneseq
    %v146 = vshrl.u32 %v145, 7
    %v147 = vsub.s32 %v144, %v146
    %v148 = vrot.slane %v140, %v147
    %v150 = vunpack.c.l.s4 1983009808
    %v151 = vunpack.c.0.s8 %v150
    %v152 = vlaneseq
    %v153 = vshrl.u32 %v152, 7
    %v154 = vsub.s32 %v151, %v153
    %v155 = vrot.slane %v141, %v154
    %v156 = vcombine.low %v148, %v155
    %v159 = vadd.f32 %v38, %v139
    %v160 = vadd.f32 %v39, %v156
    %vm161 = vcmask 261120
    %162 = vst.msk [vmem:[#allocation7] sm:$0xff] %vm161, %v159
    %163 = vst.msk [vmem:[#allocation7 + $0x8] sm:$0xff] %vm161, %v160
    // Predicated region
    $region18: #{tpu_custom_call.1} parent=1 // pred_check
      _
    $region19: #{tpu_custom_call.1} parent=1 // pred_check_branch
      %165 = sbr.rel (0) target = $region21
    $region20: #{tpu_custom_call.1} parent=1 // pred_region
      %s167 = ssub.s32 256, 256
      %168 = vsyncadd [#allocation4], %s167
      %s169 = sshll.u32 [#allocation7], 4
      %s170 = int_to_ptr.vmem [resolvable:$true] %s169
      %175 = dma.vmem_to_hbm [thread:$0]  %s170, 256, %s2, [#allocation4], 128, 128, 8
    $region21: #{tpu_custom_call.1} parent=1 // pred_fallthru
      _
    // Predicated region
    $region22: #{tpu_custom_call.1} parent=1 // pred_check
      _
    $region23: #{tpu_custom_call.1} parent=1 // pred_check_branch
      %177 = sbr.rel (0) target = $region25
    $region24: #{tpu_custom_call.1} parent=1 // pred_region
      %178 = dma.done [#allocation4], 256
    $region25: #{tpu_custom_call.1} parent=1 // pred_fallthru
      _
    %179 = vsyncpa [#allocation3], 1
    %180 = vsyncpa [#allocation6], 1
    %181 = vsyncpa [#allocation4], 1

</llo_original>
